<compile_context>
chip_gen: v7x
topology: tpu7x:2x2x1
jax: 0.10.0
libtpu: 0.0.40
codegen_flags: <defaults>
</compile_context>

<pallas_src>
import functools
import math

import jax
import jax.numpy as jnp
from jax.experimental import pallas as pl
from jax.experimental.pallas import tpu as pltpu


# ----------------------------------------------------------------------------
# Pallas kernel: 3x3 "same" conv on one (batch, row-tile) block
# ----------------------------------------------------------------------------
def _conv3x3_kernel(x_ref, w_ref, b_ref, o_ref):
    # x_ref: (1, 1, TH+2, W+2, Cin)  halo row-window for this (batch, row-tile)
    # w_ref: (9*Cin, Cout)           tap-major weight slab, K = (ky*3+kx)*Cin+ci
    # b_ref: (1, Cout)
    # o_ref: (1, TH, W, Cout)
    _, TH, W, Cout = o_ref.shape
    xw = x_ref[0, 0]                                    # (TH+2, W+2, Cin)

    # im2col: 9 statically shifted views concatenated along the channel axis.
    taps = [xw[dy:dy + TH, dx:dx + W, :] for dy in range(3) for dx in range(3)]
    patch = jnp.concatenate(taps, axis=-1)              # (TH, W, 9*Cin)

    # Single MXU contraction with K = 9*Cin, f32 accumulation.
    acc = jnp.einsum("hwk,ko->hwo", patch, w_ref[...],
                     preferred_element_type=jnp.float32)
    acc = acc + b_ref[0][None, None, :].astype(jnp.float32)
    o_ref[0] = acc.astype(o_ref.dtype)


def _pick_row_tile(H, W, Cout, budget_bytes=2 << 20):
    """Largest divisor of H whose f32 output tile fits the budget (prefer mult of 8)."""
    divisors = [d for d in range(1, H + 1) if H % d == 0]
    fits = [d for d in divisors if d * W * Cout * 4 <= budget_bytes]
    if not fits:
        return 1
    mult8 = [d for d in fits if d % 8 == 0]
    return max(mult8) if mult8 else max(fits)


def conv3x3_pallas(x_nhwc, w_slab, bias, row_tile=None):
    """x_nhwc: (B,H,W,Cin), w_slab: (9*Cin,Cout), bias: (Cout,) -> (B,H,W,Cout)."""
    B, H, W, Cin = x_nhwc.shape
    Cout = w_slab.shape[-1]
    TH = _pick_row_tile(H, W, Cout) if row_tile is None else row_tile
    assert H % TH == 0, "row_tile must divide H"
    nH = H // TH

    # "same" padding + overlapping halo row-windows in one fused XLA data-movement pass.
    # TODO(synk): replace with an in-kernel halo DMA (memory_space=pl.ANY) to avoid
    # duplicating ~2/TH of the input rows in HBM.
    x_pad = jnp.pad(x_nhwc, ((0, 0), (1, 1), (1, 1), (0, 0)))
    row_idx = jnp.arange(nH)[:, None] * TH + jnp.arange(TH + 2)[None, :]
    x_win = x_pad[:, row_idx]                            # (B, nH, TH+2, W+2, Cin)

    bias2d = bias.reshape(1, Cout).astype(jnp.float32)

    return pl.pallas_call(
        _conv3x3_kernel,
        out_shape=jax.ShapeDtypeStruct((B, H, W, Cout), x_nhwc.dtype),
        grid_spec=pltpu.PrefetchScalarGridSpec(
            num_scalar_prefetch=0,
            grid=(B, nH),
            in_specs=[
                pl.BlockSpec((1, 1, TH + 2, W + 2, Cin),
                             lambda b, t: (b, t, 0, 0, 0)),
                pl.BlockSpec((9 * Cin, Cout), lambda b, t: (0, 0)),
                pl.BlockSpec((1, Cout), lambda b, t: (0, 0)),
            ],
            out_specs=pl.BlockSpec((1, TH, W, Cout), lambda b, t: (b, t, 0, 0)),
        ),
        compiler_params=pltpu.CompilerParams(
            dimension_semantics=("parallel", "parallel")),
    )(x_win, w_slab, bias2d)


# ----------------------------------------------------------------------------
# Parameter construction (deterministic ICNR init, mirrors the PyTorch module)
# ----------------------------------------------------------------------------
def make_upsample_params(key, in_channels):
    """Returns (weight_oikk, bias): weight (4C, C, 3, 3) ICNR-initialized."""
    C = in_channels
    k_w, k_b = jax.random.split(key)

    fan_in = C * 3 * 3
    std = math.sqrt(2.0 / fan_in)
    subkernel = jax.random.normal(k_w, (C, C, 3, 3), jnp.float32) * std

    # ICNR: every group of 4 consecutive output channels shares one sub-kernel.
    weight = jnp.repeat(subkernel, 4, axis=0)            # (4C, C, 3, 3)

    bound = 1.0 / math.sqrt(fan_in)
    bias = jax.random.uniform(k_b, (4 * C,), jnp.float32, -bound, bound)
    return weight, bias


# ----------------------------------------------------------------------------
# Full UpsampleBlock forward (NCHW in, NCHW out — PyTorch semantics)
# ----------------------------------------------------------------------------
def upsample_block_forward(x_nchw, weight_oikk, bias, row_tile=None):
    B, C, H, W = x_nchw.shape
    Cout = weight_oikk.shape[0]                          # 4*C

    x_nhwc = jnp.transpose(x_nchw, (0, 2, 3, 1))
    # (Cout, Cin, 3, 3) -> (3, 3, Cin, Cout) -> (9*Cin, Cout); K=(ky*3+kx)*Cin+ci
    w_slab = jnp.transpose(weight_oikk, (2, 3, 1, 0)).reshape(9 * C, Cout)

    y = conv3x3_pallas(x_nhwc, w_slab, bias, row_tile=row_tile)   # (B, H, W, 4C)

    # PixelShuffle(2) + NHWC->NCHW as a single XLA transpose:
    #   conv channel o = c*4 + i*2 + j  ->  out[b, c, 2h+i, 2w+j]
    # TODO(synk): fuse into the kernel store (needs a lane<->sublane relayout of
    # the (TH*W, 4C) matmul result inside the kernel).
    y = y.reshape(B, H, W, C, 2, 2)
    y = jnp.transpose(y, (0, 3, 1, 4, 2, 5))             # (B, C, H, 2, W, 2)
    return y.reshape(B, C, 2 * H, 2 * W)


# ----------------------------------------------------------------------------
# Pure-JAX reference (correctness sanity check)
# ----------------------------------------------------------------------------
def _reference_forward(x_nchw, weight_oikk, bias):
    y = jax.lax.conv_general_dilated(
        x_nchw, weight_oikk,
        window_strides=(1, 1), padding=((1, 1), (1, 1)),
        dimension_numbers=("NCHW", "OIHW", "NCHW"),
    ) + bias[None, :, None, None]
    B, C4, H, W = y.shape
    C = C4 // 4
    y = y.reshape(B, C, 2, 2, H, W)
    y = jnp.transpose(y, (0, 1, 4, 2, 5, 3))             # (B, C, H, 2, W, 2)
    return y.reshape(B, C, 2 * H, 2 * W)


if __name__ == "__main__":
    key = jax.random.PRNGKey(0)
    k_param, k_x = jax.random.split(key)

    B, C, H, W = 2, 4, 16, 16
    weight, bias = make_upsample_params(k_param, in_channels=C)
    x = jax.random.normal(k_x, (B, C, H, W), jnp.float32)

    # row_tile=8 -> grid (B=2, nH=2): exercises the row-tiled pipeline.
    fwd = jax.jit(functools.partial(upsample_block_forward, row_tile=8))
    out = jax.block_until_ready(fwd(x, weight, bias))
    assert out.shape == (B, C, 2 * H, 2 * W), out.shape

    ref = jax.block_until_ready(_reference_forward(x, weight, bias))
    assert jnp.allclose(out, ref, atol=1e-4, rtol=1e-4), "mismatch vs reference"

    print("KERNEL_OK")
</pallas_src>

<mosaic_0001>
module attributes {stable_mosaic.version = 11 : i64} {
  func.func @_conv3x3_kernel(%arg0: i32, %arg1: i32, %arg2: memref<1x1x10x18x4xf32, #tpu.memory_space<vmem>>, %arg3: memref<36x16xf32, #tpu.memory_space<vmem>>, %arg4: memref<1x16xf32, #tpu.memory_space<vmem>>, %arg5: memref<1x8x16x16xf32, #tpu.memory_space<vmem>>) attributes {dimension_semantics = [#tpu.dimension_semantics<parallel>, #tpu.dimension_semantics<parallel>], iteration_bounds = array<i64: 2, 2>, scalar_prefetch = 0 : i64, scratch_operands = 0 : i64, tpu.core_type = #tpu.core_type<tc>, window_params = [{transform_indices = @transform_0, window_bounds = array<i64: 1, 1, 10, 18, 4>}, {pipeline_mode = #tpu.pipeline_mode<synchronous>, transform_indices = @transform_1, window_bounds = array<i64: 36, 16>}, {pipeline_mode = #tpu.pipeline_mode<synchronous>, transform_indices = @transform_2, window_bounds = array<i64: 1, 16>}, {transform_indices = @transform_3, window_bounds = array<i64: 1, 8, 16, 16>}]} {
    %c0 = arith.constant 0 : index
    %c0_0 = arith.constant 0 : index
    %c0_1 = arith.constant 0 : index
    %c0_2 = arith.constant 0 : index
    %c0_3 = arith.constant 0 : index
    %0 = vector.load %arg2[%c0, %c0_0, %c0_1, %c0_2, %c0_3] : memref<1x1x10x18x4xf32, #tpu.memory_space<vmem>>, vector<1x1x10x18x4xf32>
    %1 = vector.shape_cast %0 : vector<1x1x10x18x4xf32> to vector<10x18x4xf32>
    %2 = vector.extract_strided_slice %1 {offsets = [0, 0, 0], sizes = [8, 16, 4], strides = [1, 1, 1]} : vector<10x18x4xf32> to vector<8x16x4xf32>
    %3 = vector.extract_strided_slice %1 {offsets = [0, 1, 0], sizes = [8, 16, 4], strides = [1, 1, 1]} : vector<10x18x4xf32> to vector<8x16x4xf32>
    %4 = vector.extract_strided_slice %1 {offsets = [0, 2, 0], sizes = [8, 16, 4], strides = [1, 1, 1]} : vector<10x18x4xf32> to vector<8x16x4xf32>
    %5 = vector.extract_strided_slice %1 {offsets = [1, 0, 0], sizes = [8, 16, 4], strides = [1, 1, 1]} : vector<10x18x4xf32> to vector<8x16x4xf32>
    %6 = vector.extract_strided_slice %1 {offsets = [1, 1, 0], sizes = [8, 16, 4], strides = [1, 1, 1]} : vector<10x18x4xf32> to vector<8x16x4xf32>
    %7 = vector.extract_strided_slice %1 {offsets = [1, 2, 0], sizes = [8, 16, 4], strides = [1, 1, 1]} : vector<10x18x4xf32> to vector<8x16x4xf32>
    %8 = vector.extract_strided_slice %1 {offsets = [2, 0, 0], sizes = [8, 16, 4], strides = [1, 1, 1]} : vector<10x18x4xf32> to vector<8x16x4xf32>
    %9 = vector.extract_strided_slice %1 {offsets = [2, 1, 0], sizes = [8, 16, 4], strides = [1, 1, 1]} : vector<10x18x4xf32> to vector<8x16x4xf32>
    %10 = vector.extract_strided_slice %1 {offsets = [2, 2, 0], sizes = [8, 16, 4], strides = [1, 1, 1]} : vector<10x18x4xf32> to vector<8x16x4xf32>
    %11 = tpu.concatenate %2, %3, %4, %5, %6, %7, %8, %9, %10 in 2 : vector<8x16x4xf32>, vector<8x16x4xf32>, vector<8x16x4xf32>, vector<8x16x4xf32>, vector<8x16x4xf32>, vector<8x16x4xf32>, vector<8x16x4xf32>, vector<8x16x4xf32>, vector<8x16x4xf32> -> vector<8x16x36xf32>
    %c0_4 = arith.constant 0 : index
    %c0_5 = arith.constant 0 : index
    %12 = vector.load %arg3[%c0_4, %c0_5] : memref<36x16xf32, #tpu.memory_space<vmem>>, vector<36x16xf32>
    "tpu.trace_start"() <{level = 10 : i32, message = "hwk,ko->hwo"}> : () -> ()
    %cst = arith.constant dense<0.000000e+00> : vector<8x16x16xf32>
    %13 = tpu.matmul %11, %12, %cst {dimension_numbers = #tpu.dot_dimension_numbers<[2], [0], [0, 1], [1], [0, 0, 0, 1, 1, 1], [], []>} : vector<8x16x36xf32>, vector<36x16xf32>, vector<8x16x16xf32> -> vector<8x16x16xf32>
    "tpu.trace_stop"() : () -> ()
    %c0_6 = arith.constant 0 : index
    %c0_7 = arith.constant 0 : index
    %14 = vector.load %arg4[%c0_6, %c0_7] : memref<1x16xf32, #tpu.memory_space<vmem>>, vector<1x16xf32>
    %15 = vector.shape_cast %14 : vector<1x16xf32> to vector<16xf32>
    %16 = vector.shape_cast %15 : vector<16xf32> to vector<1x1x16xf32>
    %17 = vector.broadcast %16 : vector<1x1x16xf32> to vector<8x16x16xf32>
    %18 = arith.addf %13, %17 : vector<8x16x16xf32>
    %c0_8 = arith.constant 0 : index
    %c0_9 = arith.constant 0 : index
    %c0_10 = arith.constant 0 : index
    %c0_11 = arith.constant 0 : index
    %19 = vector.load %arg5[%c0_8, %c0_9, %c0_10, %c0_11] : memref<1x8x16x16xf32, #tpu.memory_space<vmem>>, vector<1x8x16x16xf32>
    %20 = vector.shape_cast %19 : vector<1x8x16x16xf32> to vector<8x16x16xf32>
    %21 = vector.shape_cast %18 : vector<8x16x16xf32> to vector<1x8x16x16xf32>
    tpu.vector_store %arg5[%c0_8, %c0_9, %c0_10, %c0_11], %21 {strides = array<i32>} : memref<1x8x16x16xf32, #tpu.memory_space<vmem>>, vector<1x8x16x16xf32>,
    return
  }
  func.func @transform_0(%arg0: i32, %arg1: i32) -> (i32, i32, i32, i32, i32) {
    %c0_i32 = arith.constant 0 : i32
    %c0_i32_0 = arith.constant 0 : i32
    %c0_i32_1 = arith.constant 0 : i32
    %c0_i32_2 = arith.constant 0 : i32
    return %arg0, %arg1, %c0_i32, %c0_i32_0, %c0_i32_1 : i32, i32, i32, i32, i32
  }
  func.func @transform_1(%arg0: i32, %arg1: i32) -> (i32, i32) {
    %c0_i32 = arith.constant 0 : i32
    %c0_i32_0 = arith.constant 0 : i32
    %c0_i32_1 = arith.constant 0 : i32
    return %c0_i32, %c0_i32_0 : i32, i32
  }
  func.func @transform_2(%arg0: i32, %arg1: i32) -> (i32, i32) {
    %c0_i32 = arith.constant 0 : i32
    %c0_i32_0 = arith.constant 0 : i32
    %c0_i32_1 = arith.constant 0 : i32
    return %c0_i32, %c0_i32_0 : i32, i32
  }
  func.func @transform_3(%arg0: i32, %arg1: i32) -> (i32, i32, i32, i32) {
    %c0_i32 = arith.constant 0 : i32
    %c0_i32_0 = arith.constant 0 : i32
    %c0_i32_1 = arith.constant 0 : i32
    return %arg0, %arg1, %c0_i32, %c0_i32_0 : i32, i32, i32, i32
  }
}

</mosaic_0001>

<llo_original>
// kernel: upsample_block_forward.1
$region0: #{upsample_block_forward.1}
  #allocation0 [shape = 'u32[]', space=smem, size = 0x4, offset = 0x4, fixed_abs, tag = 'smem constant byte address 0x4 - core index']
  #allocation1 [shape = 'u32[144,128]{1,0:T(1,128)}', space=vmem, size = 0x12000, scoped, tag = 'internal scratch']
  %s0 = inlined_call_operand.vmem [shape: f32[2,2,10,18,4], index: 0, kind: input, shape index: {}]
  %s1 = inlined_call_operand.vmem [shape: f32[36,16], index: 1, kind: input, shape index: {}]
  %s2 = inlined_call_operand.vmem [shape: f32[1,16], index: 2, kind: input, shape index: {}]
  %s3 = inlined_call_operand.vmem [shape: f32[2,16,16,16], index: 3, kind: output, shape index: {}]
  %s4 = sld [smem:[#allocation0]]
  $region45: #{upsample_block_forward.1} parent=0
    _
  %s6 = ssub.s32 1, %s4
  %s7 = scalar_select 0, %s6, %s4
  loop: start=0, step=1, limit=6
  $region2: #{upsample_block_forward.1} parent=0 // loop_pre_header
    _
  $region3: #{upsample_block_forward.1} parent=0 // loop_header
    %s9 = sphi 0, %s13
    %p10 = scmp.ge.s32.totalorder %s9, 6
    %s16 = sphi 0, %s28
    %s17 = sphi 0, %s24
    %s18 = sphi 0, %s16
    %s19 = sphi 0, %s17
    %s20 = sphi 0, %s18
    %s21 = sphi 0, %s19
    %s33 = sphi 0, %s35
    %s36 = sphi 0, %s33
    %s37 = sphi 0, %s36
    %s53 = sphi 0, %s37
    %s57 = sphi 0, %s57
    %s59 = sphi 0, %s57
    %s60 = sphi 0, %s59
    %s74 = sphi 0, %s60
    %s78 = sphi 0, %s78
    %s80 = sphi 0, %s78
    %s81 = sphi 0, %s80
    %s95 = sphi 0, %s81
    %s103 = sphi 0, %s105
    %s106 = sphi 0, %s103
    %s107 = sphi 0, %s106
    %s123 = sphi 0, %s107
  $region4: #{upsample_block_forward.1} parent=0 // loop_header_branch
    %12 = sbr.rel (%p10) target = $region8
  $region5: #{upsample_block_forward.1} parent=0 // loop_body
    %s14 = ssub.s32 %s9, 1
    %s15 = ssub.s32 %s9, 2
    %s22 = sadd.s32 1, %s17
    %p23 = scmp.ge.s32.totalorder %s22, 2
    %s24 = scalar_select %p23, 0, %s22
    %s25 = sadd.s32 1, %s16
    %s26 = scalar_select %p23, %s25, %s16
    %p27 = scmp.ge.s32.totalorder %s26, 2
    %s28 = scalar_select %p27, 0, %s26
    %s29 = ssub.s32 %s16, %s28
    %s30 = ssub.s32 %s17, %s24
    %s31 = sor.u32 %s29, %s30
    %p32 = scmp.eq.s32.totalorder %s31, 0
    %s34 = sadd.s32 %s33, 1
    %s35 = scalar_select %p32, %s33, %s34
    %p38 = pneg %p32
    %p39 = scmp.eq.s32.totalorder %s9, 3
    %p40 = por %p38, %p39
    %p41 = scmp.ne.s32.totalorder %s33, %s36
    %p42 = scmp.eq.s32.totalorder %s9, 0
    %p43 = por %p41, %p42
    %p44 = scmp.ne.s32.totalorder %s33, %s36
    %p45 = scmp.eq.s32.totalorder %s14, 3
    %p46 = por %p44, %p45
    %p47 = scmp.ne.s32.totalorder %s36, %s37
    %p48 = scmp.eq.s32.totalorder %s14, 0
    %p49 = por %p47, %p48
    %p50 = scmp.ne.s32.totalorder %s36, %s37
    %p51 = scmp.eq.s32.totalorder %s15, 3
    %p52 = por %p50, %p51
    %p54 = scmp.ne.s32.totalorder %s37, %s53
    %p55 = scmp.eq.s32.totalorder %s15, 0
    %p56 = por %p54, %p55
    %s58 = sadd.s32 %s57, 1
    %p61 = scmp.eq.s32.totalorder %s9, 3
    %p62 = scmp.ne.s32.totalorder %s57, %s59
    %p63 = scmp.eq.s32.totalorder %s9, 0
    %p64 = por %p62, %p63
    %p65 = scmp.ne.s32.totalorder %s57, %s59
    %p66 = scmp.eq.s32.totalorder %s14, 3
    %p67 = por %p65, %p66
    %p68 = scmp.ne.s32.totalorder %s59, %s60
    %p69 = scmp.eq.s32.totalorder %s14, 0
    %p70 = por %p68, %p69
    %p71 = scmp.ne.s32.totalorder %s59, %s60
    %p72 = scmp.eq.s32.totalorder %s15, 3
    %p73 = por %p71, %p72
    %p75 = scmp.ne.s32.totalorder %s60, %s74
    %p76 = scmp.eq.s32.totalorder %s15, 0
    %p77 = por %p75, %p76
    %s79 = sadd.s32 %s78, 1
    %p82 = scmp.eq.s32.totalorder %s9, 3
    %p83 = scmp.ne.s32.totalorder %s78, %s80
    %p84 = scmp.eq.s32.totalorder %s9, 0
    %p85 = por %p83, %p84
    %p86 = scmp.ne.s32.totalorder %s78, %s80
    %p87 = scmp.eq.s32.totalorder %s14, 3
    %p88 = por %p86, %p87
    %p89 = scmp.ne.s32.totalorder %s80, %s81
    %p90 = scmp.eq.s32.totalorder %s14, 0
    %p91 = por %p89, %p90
    %p92 = scmp.ne.s32.totalorder %s80, %s81
    %p93 = scmp.eq.s32.totalorder %s15, 3
    %p94 = por %p92, %p93
    %p96 = scmp.ne.s32.totalorder %s81, %s95
    %p97 = scmp.eq.s32.totalorder %s15, 0
    %p98 = por %p96, %p97
    %s99 = ssub.s32 %s16, %s28
    %s100 = ssub.s32 %s17, %s24
    %s101 = sor.u32 %s99, %s100
    %p102 = scmp.eq.s32.totalorder %s101, 0
    %s104 = sadd.s32 %s103, 1
    %s105 = scalar_select %p102, %s103, %s104
    %p108 = pneg %p102
    %p109 = scmp.eq.s32.totalorder %s9, 3
    %p110 = por %p108, %p109
    %p111 = scmp.ne.s32.totalorder %s103, %s106
    %p112 = scmp.eq.s32.totalorder %s9, 0
    %p113 = por %p111, %p112
    %p114 = scmp.ne.s32.totalorder %s103, %s106
    %p115 = scmp.eq.s32.totalorder %s14, 3
    %p116 = por %p114, %p115
    %p117 = scmp.ne.s32.totalorder %s106, %s107
    %p118 = scmp.eq.s32.totalorder %s14, 0
    %p119 = por %p117, %p118
    %p120 = scmp.ne.s32.totalorder %s106, %s107
    %p121 = scmp.eq.s32.totalorder %s15, 3
    %p122 = por %p120, %p121
    %p124 = scmp.ne.s32.totalorder %s107, %s123
    %p125 = scmp.eq.s32.totalorder %s15, 0
    %p126 = por %p124, %p125
    %p127 = scmp.le.s32.totalorder 1, %s9
    %p128 = scmp.lt.s32.totalorder %s9, 5
    %p129 = pnand %p127, %p128
    %p130 = pneg %p129
    // Predicated region
    $region9: #{upsample_block_forward.1} parent=5 // pred_check
      _
    $region10: #{upsample_block_forward.1} parent=5 // pred_check_branch
      %132 = sbr.rel (%p129) target = $region12
    $region11: #{upsample_block_forward.1} parent=5 // pred_region
      %s133 = ssub.s32 %s9, 1
      // Predicated region
      $region13: #{upsample_block_forward.1} parent=11 // pred_check
        %p134 = pneg %p70
      $region14: #{upsample_block_forward.1} parent=11 // pred_check_branch
        %136 = sbr.rel (%p134) target = $region16
      $region15: #{upsample_block_forward.1} parent=11 // pred_region
        _
      $region16: #{upsample_block_forward.1} parent=11 // pred_fallthru
        _
      // Predicated region
      $region17: #{upsample_block_forward.1} parent=11 // pred_check
        %p137 = pneg %p91
      $region18: #{upsample_block_forward.1} parent=11 // pred_check_branch
        %139 = sbr.rel (%p137) target = $region20
      $region19: #{upsample_block_forward.1} parent=11 // pred_region
        _
      $region20: #{upsample_block_forward.1} parent=11 // pred_fallthru
        _
    $region12: #{upsample_block_forward.1} parent=5 // pred_fallthru
      _
    %p140 = scmp.lt.s32.totalorder %s9, 4
    // Predicated region
    $region21: #{upsample_block_forward.1} parent=5 // pred_check
      %p141 = pneg %p140
    $region22: #{upsample_block_forward.1} parent=5 // pred_check_branch
      %143 = sbr.rel (%p141) target = $region24
    $region23: #{upsample_block_forward.1} parent=5 // pred_region
      // Predicated region
      $region25: #{upsample_block_forward.1} parent=23 // pred_check
        %p144 = pneg %p43
      $region26: #{upsample_block_forward.1} parent=23 // pred_check_branch
        %146 = sbr.rel (%p144) target = $region28
      $region27: #{upsample_block_forward.1} parent=23 // pred_region
        %p147 = scmp.lt.s32.totalorder %s16, 1
        %s148 = scalar_select %p147, %s16, 1
        %p149 = scmp.lt.s32.totalorder %s17, 1
        %s150 = scalar_select %p149, %s17, 1
        %s151 = smul.addr %s150, 30
        %s152 = smul.addr %s148, 60
        %s153 = sadd.s32 %s151, %s152
        %s154 = smul.addr %s153, 8
        %s155 = scalar_lea.vmem %s0, %s154
      $region28: #{upsample_block_forward.1} parent=23 // pred_fallthru
        _
    $region24: #{upsample_block_forward.1} parent=5 // pred_fallthru
      _
    %p156 = scmp.le.s32.totalorder 1, %s9
    %p157 = scmp.lt.s32.totalorder %s9, 5
    %p158 = pnand %p156, %p157
    %p159 = pneg %p158
    // Predicated region
    $region29: #{upsample_block_forward.1} parent=5 // pred_check
      _
    $region30: #{upsample_block_forward.1} parent=5 // pred_check_branch
      %161 = sbr.rel (%p158) target = $region32
    $region31: #{upsample_block_forward.1} parent=5 // pred_region
      %s162 = ssub.s32 %s9, 1
      %p163 = scmp.lt.s32.totalorder %s18, 1
      %s164 = scalar_select %p163, %s18, 1
      %p165 = scmp.lt.s32.totalorder %s19, 1
      %s166 = scalar_select %p165, %s19, 1
      %s167 = smul.addr %s166, 30
      %s168 = smul.addr %s164, 60
      %s169 = sadd.s32 %s167, %s168
      %s170 = smul.addr %s169, 8
      %s171 = scalar_lea.vmem %s0, %s170
      %p172 = pneg %p49
      %p173 = pneg %p46
      %p174 = pneg %p70
      %p175 = pneg %p67
      %p176 = pneg %p91
      %p177 = pneg %p88
      %p178 = pneg %p119
      %p179 = pneg %p116
      %s180 = smul.u32 8, %s19
      %p181 = scmp.lt.s32.totalorder %s18, 1
      %s182 = scalar_select %p181, %s18, 1
      %p183 = scmp.lt.s32.totalorder %s180, 15
      %s184 = scalar_select %p183, %s180, 15
      %s185 = smul.addr %s184, 2
      %s186 = smul.addr %s182, 32
      %s187 = sadd.s32 %s185, %s186
      %s188 = smul.addr %s187, 8
      %s189 = scalar_lea.vmem %s3, %s188
      %p190 = scmp.lt.s32.totalorder %s18, 1
      %s191 = scalar_select %p190, %s18, 1
      %p192 = scmp.lt.s32.totalorder %s19, 1
      %s193 = scalar_select %p192, %s19, 1
      %s194 = smul.addr %s193, 30
      %s195 = smul.addr %s191, 60
      %s196 = sadd.s32 %s194, %s195
      %s197 = smul.addr %s196, 8
      %s198 = scalar_lea.vmem %s0, %s197
      %s199 = smul.u32 8, %s19
      %p200 = scmp.lt.s32.totalorder %s18, 1
      %s201 = scalar_select %p200, %s18, 1
      %p202 = scmp.lt.s32.totalorder %s199, 15
      %s203 = scalar_select %p202, %s199, 15
      %s204 = smul.addr %s203, 2
      %s205 = smul.addr %s201, 32
      %s206 = sadd.s32 %s204, %s205
      %s207 = smul.addr %s206, 8
      %s208 = scalar_lea.vmem %s3, %s207
      %s209 = smul.u32 8, %s19
      %v210 = vld [vmem:[%s198] sm:$0xff]
      %v211 = vld [vmem:[%s198 + $0x8] sm:$0xff]
      %v212 = vld [vmem:[%s198 + $0x10] sm:$0x3]
      %v213 = vld [vmem:[%s198 + $0x18] sm:$0xff]
      %v214 = vld [vmem:[%s198 + $0x20] sm:$0xff]
      %v215 = vld [vmem:[%s198 + $0x28] sm:$0x3]
      %v216 = vld [vmem:[%s198 + $0x30] sm:$0xff]
      %v217 = vld [vmem:[%s198 + $0x38] sm:$0xff]
      %v218 = vld [vmem:[%s198 + $0x40] sm:$0x3]
      %v219 = vld [vmem:[%s198 + $0x48] sm:$0xff]
      %v220 = vld [vmem:[%s198 + $0x50] sm:$0xff]
      %v221 = vld [vmem:[%s198 + $0x58] sm:$0x3]
      %v222 = vld [vmem:[%s198 + $0x60] sm:$0xff]
      %v223 = vld [vmem:[%s198 + $0x68] sm:$0xff]
      %v224 = vld [vmem:[%s198 + $0x70] sm:$0x3]
      %v225 = vld [vmem:[%s198 + $0x78] sm:$0xff]
      %v226 = vld [vmem:[%s198 + $0x80] sm:$0xff]
      %v227 = vld [vmem:[%s198 + $0x88] sm:$0x3]
      %v228 = vld [vmem:[%s198 + $0x90] sm:$0xff]
      %v229 = vld [vmem:[%s198 + $0x98] sm:$0xff]
      %v230 = vld [vmem:[%s198 + $0xa0] sm:$0x3]
      %v231 = vld [vmem:[%s198 + $0xa8] sm:$0xff]
      %v232 = vld [vmem:[%s198 + $0xb0] sm:$0xff]
      %v233 = vld [vmem:[%s198 + $0xb8] sm:$0x3]
      %v234 = vld [vmem:[%s198 + $0xc0] sm:$0xff]
      %v235 = vld [vmem:[%s198 + $0xc8] sm:$0xff]
      %v236 = vld [vmem:[%s198 + $0xd0] sm:$0x3]
      %v237 = vld [vmem:[%s198 + $0xd8] sm:$0xff]
      %v238 = vld [vmem:[%s198 + $0xe0] sm:$0xff]
      %v239 = vld [vmem:[%s198 + $0xe8] sm:$0x3]
      %vm264 = vcmask 1046528
      %v265 = vrot.slane %v210, 1
      %v266 = vrot.slane %v211, 1
      %v267 = vsel %vm264, %v265, %v266
      %v268 = vrot.slane %v212, 1
      %v269 = vsel %vm264, %v266, %v268
      %v270 = vrot.slane %v213, 1
      %v271 = vrot.slane %v214, 1
      %v272 = vsel %vm264, %v270, %v271
      %v273 = vrot.slane %v215, 1
      %v274 = vsel %vm264, %v271, %v273
      %v275 = vrot.slane %v216, 1
      %v276 = vrot.slane %v217, 1
      %v277 = vsel %vm264, %v275, %v276
      %v278 = vrot.slane %v218, 1
      %v279 = vsel %vm264, %v276, %v278
      %v280 = vrot.slane %v219, 1
      %v281 = vrot.slane %v220, 1
      %v282 = vsel %vm264, %v280, %v281
      %v283 = vrot.slane %v221, 1
      %v284 = vsel %vm264, %v281, %v283
      %v285 = vrot.slane %v222, 1
      %v286 = vrot.slane %v223, 1
      %v287 = vsel %vm264, %v285, %v286
      %v288 = vrot.slane %v224, 1
      %v289 = vsel %vm264, %v286, %v288
      %v290 = vrot.slane %v225, 1
      %v291 = vrot.slane %v226, 1
      %v292 = vsel %vm264, %v290, %v291
      %v293 = vrot.slane %v227, 1
      %v294 = vsel %vm264, %v291, %v293
      %v295 = vrot.slane %v228, 1
      %v296 = vrot.slane %v229, 1
      %v297 = vsel %vm264, %v295, %v296
      %v298 = vrot.slane %v230, 1
      %v299 = vsel %vm264, %v296, %v298
      %v300 = vrot.slane %v231, 1
      %v301 = vrot.slane %v232, 1
      %v302 = vsel %vm264, %v300, %v301
      %v303 = vrot.slane %v233, 1
      %v304 = vsel %vm264, %v301, %v303
      %305 = vrot.lane.b32.xlu0 %v267, 4
      %v306 = vpop.permute.xlu0 %305
      %307 = vrot.lane.b32.xlu0 %v269, 4
      %v308 = vpop.permute.xlu0 %307
      %309 = vrot.lane.b32.xlu0 %v272, 4
      %v310 = vpop.permute.xlu0 %309
      %311 = vrot.lane.b32.xlu0 %v274, 4
      %v312 = vpop.permute.xlu0 %311
      %313 = vrot.lane.b32.xlu0 %v277, 4
      %v314 = vpop.permute.xlu0 %313
      %315 = vrot.lane.b32.xlu0 %v279, 4
      %v316 = vpop.permute.xlu0 %315
      %317 = vrot.lane.b32.xlu0 %v282, 4
      %v318 = vpop.permute.xlu0 %317
      %319 = vrot.lane.b32.xlu0 %v284, 4
      %v320 = vpop.permute.xlu0 %319
      %321 = vrot.lane.b32.xlu0 %v287, 4
      %v322 = vpop.permute.xlu0 %321
      %323 = vrot.lane.b32.xlu0 %v289, 4
      %v324 = vpop.permute.xlu0 %323
      %325 = vrot.lane.b32.xlu0 %v292, 4
      %v326 = vpop.permute.xlu0 %325
      %327 = vrot.lane.b32.xlu0 %v294, 4
      %v328 = vpop.permute.xlu0 %327
      %329 = vrot.lane.b32.xlu0 %v297, 4
      %v330 = vpop.permute.xlu0 %329
      %331 = vrot.lane.b32.xlu0 %v299, 4
      %v332 = vpop.permute.xlu0 %331
      %333 = vrot.lane.b32.xlu0 %v302, 4
      %v334 = vpop.permute.xlu0 %333
      %335 = vrot.lane.b32.xlu0 %v304, 4
      %v336 = vpop.permute.xlu0 %335
      %vm353 = vcmask 1045504
      %v354 = vrot.slane %v210, 2
      %v355 = vrot.slane %v211, 2
      %v356 = vsel %vm353, %v354, %v355
      %v357 = vrot.slane %v212, 2
      %v358 = vsel %vm353, %v355, %v357
      %v359 = vrot.slane %v213, 2
      %v360 = vrot.slane %v214, 2
      %v361 = vsel %vm353, %v359, %v360
      %v362 = vrot.slane %v215, 2
      %v363 = vsel %vm353, %v360, %v362
      %v364 = vrot.slane %v216, 2
      %v365 = vrot.slane %v217, 2
      %v366 = vsel %vm353, %v364, %v365
      %v367 = vrot.slane %v218, 2
      %v368 = vsel %vm353, %v365, %v367
      %v369 = vrot.slane %v219, 2
      %v370 = vrot.slane %v220, 2
      %v371 = vsel %vm353, %v369, %v370
      %v372 = vrot.slane %v221, 2
      %v373 = vsel %vm353, %v370, %v372
      %v374 = vrot.slane %v222, 2
      %v375 = vrot.slane %v223, 2
      %v376 = vsel %vm353, %v374, %v375
      %v377 = vrot.slane %v224, 2
      %v378 = vsel %vm353, %v375, %v377
      %v379 = vrot.slane %v225, 2
      %v380 = vrot.slane %v226, 2
      %v381 = vsel %vm353, %v379, %v380
      %v382 = vrot.slane %v227, 2
      %v383 = vsel %vm353, %v380, %v382
      %v384 = vrot.slane %v228, 2
      %v385 = vrot.slane %v229, 2
      %v386 = vsel %vm353, %v384, %v385
      %v387 = vrot.slane %v230, 2
      %v388 = vsel %vm353, %v385, %v387
      %v389 = vrot.slane %v231, 2
      %v390 = vrot.slane %v232, 2
      %v391 = vsel %vm353, %v389, %v390
      %v392 = vrot.slane %v233, 2
      %v393 = vsel %vm353, %v390, %v392
      %394 = vrot.lane.b32.xlu0 %v356, 8
      %v395 = vpop.permute.xlu0 %394
      %396 = vrot.lane.b32.xlu0 %v358, 8
      %v397 = vpop.permute.xlu0 %396
      %398 = vrot.lane.b32.xlu0 %v361, 8
      %v399 = vpop.permute.xlu0 %398
      %400 = vrot.lane.b32.xlu0 %v363, 8
      %v401 = vpop.permute.xlu0 %400
      %402 = vrot.lane.b32.xlu0 %v366, 8
      %v403 = vpop.permute.xlu0 %402
      %404 = vrot.lane.b32.xlu0 %v368, 8
      %v405 = vpop.permute.xlu0 %404
      %406 = vrot.lane.b32.xlu0 %v371, 8
      %v407 = vpop.permute.xlu0 %406
      %408 = vrot.lane.b32.xlu0 %v373, 8
      %v409 = vpop.permute.xlu0 %408
      %410 = vrot.lane.b32.xlu0 %v376, 8
      %v411 = vpop.permute.xlu0 %410
      %412 = vrot.lane.b32.xlu0 %v378, 8
      %v413 = vpop.permute.xlu0 %412
      %414 = vrot.lane.b32.xlu0 %v381, 8
      %v415 = vpop.permute.xlu0 %414
      %416 = vrot.lane.b32.xlu0 %v383, 8
      %v417 = vpop.permute.xlu0 %416
      %418 = vrot.lane.b32.xlu0 %v386, 8
      %v419 = vpop.permute.xlu0 %418
      %420 = vrot.lane.b32.xlu0 %v388, 8
      %v421 = vpop.permute.xlu0 %420
      %422 = vrot.lane.b32.xlu0 %v391, 8
      %v423 = vpop.permute.xlu0 %422
      %424 = vrot.lane.b32.xlu0 %v393, 8
      %v425 = vpop.permute.xlu0 %424
      %444 = vrot.lane.b32.xlu0 %v213, 12
      %v445 = vpop.permute.xlu0 %444
      %446 = vrot.lane.b32.xlu0 %v214, 12
      %v447 = vpop.permute.xlu0 %446
      %448 = vrot.lane.b32.xlu0 %v216, 12
      %v449 = vpop.permute.xlu0 %448
      %450 = vrot.lane.b32.xlu0 %v217, 12
      %v451 = vpop.permute.xlu0 %450
      %452 = vrot.lane.b32.xlu0 %v219, 12
      %v453 = vpop.permute.xlu0 %452
      %454 = vrot.lane.b32.xlu0 %v220, 12
      %v455 = vpop.permute.xlu0 %454
      %456 = vrot.lane.b32.xlu0 %v222, 12
      %v457 = vpop.permute.xlu0 %456
      %458 = vrot.lane.b32.xlu0 %v223, 12
      %v459 = vpop.permute.xlu0 %458
      %460 = vrot.lane.b32.xlu0 %v225, 12
      %v461 = vpop.permute.xlu0 %460
      %462 = vrot.lane.b32.xlu0 %v226, 12
      %v463 = vpop.permute.xlu0 %462
      %464 = vrot.lane.b32.xlu0 %v228, 12
      %v465 = vpop.permute.xlu0 %464
      %466 = vrot.lane.b32.xlu0 %v229, 12
      %v467 = vpop.permute.xlu0 %466
      %468 = vrot.lane.b32.xlu0 %v231, 12
      %v469 = vpop.permute.xlu0 %468
      %470 = vrot.lane.b32.xlu0 %v232, 12
      %v471 = vpop.permute.xlu0 %470
      %472 = vrot.lane.b32.xlu0 %v234, 12
      %v473 = vpop.permute.xlu0 %472
      %474 = vrot.lane.b32.xlu0 %v235, 12
      %v475 = vpop.permute.xlu0 %474
      %v493 = vrot.slane %v234, 1
      %v494 = vrot.slane %v235, 1
      %v495 = vsel %vm264, %v493, %v494
      %v496 = vrot.slane %v236, 1
      %v497 = vsel %vm264, %v494, %v496
      %498 = vrot.lane.b32.xlu0 %v272, 16
      %v499 = vpop.permute.xlu0 %498
      %500 = vrot.lane.b32.xlu0 %v274, 16
      %v501 = vpop.permute.xlu0 %500
      %502 = vrot.lane.b32.xlu0 %v277, 16
      %v503 = vpop.permute.xlu0 %502
      %504 = vrot.lane.b32.xlu0 %v279, 16
      %v505 = vpop.permute.xlu0 %504
      %506 = vrot.lane.b32.xlu0 %v282, 16
      %v507 = vpop.permute.xlu0 %506
      %508 = vrot.lane.b32.xlu0 %v284, 16
      %v509 = vpop.permute.xlu0 %508
      %510 = vrot.lane.b32.xlu0 %v287, 16
      %v511 = vpop.permute.xlu0 %510
      %512 = vrot.lane.b32.xlu0 %v289, 16
      %v513 = vpop.permute.xlu0 %512
      %514 = vrot.lane.b32.xlu0 %v292, 16
      %v515 = vpop.permute.xlu0 %514
      %516 = vrot.lane.b32.xlu0 %v294, 16
      %v517 = vpop.permute.xlu0 %516
      %518 = vrot.lane.b32.xlu0 %v297, 16
      %v519 = vpop.permute.xlu0 %518
      %520 = vrot.lane.b32.xlu0 %v299, 16
      %v521 = vpop.permute.xlu0 %520
      %522 = vrot.lane.b32.xlu0 %v302, 16
      %v523 = vpop.permute.xlu0 %522
      %524 = vrot.lane.b32.xlu0 %v304, 16
      %v525 = vpop.permute.xlu0 %524
      %526 = vrot.lane.b32.xlu0 %v495, 16
      %v527 = vpop.permute.xlu0 %526
      %528 = vrot.lane.b32.xlu0 %v497, 16
      %v529 = vpop.permute.xlu0 %528
      %v546 = vrot.slane %v234, 2
      %v547 = vrot.slane %v235, 2
      %v548 = vsel %vm353, %v546, %v547
      %v549 = vrot.slane %v236, 2
      %v550 = vsel %vm353, %v547, %v549
      %551 = vrot.lane.b32.xlu0 %v361, 20
      %v552 = vpop.permute.xlu0 %551
      %553 = vrot.lane.b32.xlu0 %v363, 20
      %v554 = vpop.permute.xlu0 %553
      %555 = vrot.lane.b32.xlu0 %v366, 20
      %v556 = vpop.permute.xlu0 %555
      %557 = vrot.lane.b32.xlu0 %v368, 20
      %v558 = vpop.permute.xlu0 %557
      %559 = vrot.lane.b32.xlu0 %v371, 20
      %v560 = vpop.permute.xlu0 %559
      %561 = vrot.lane.b32.xlu0 %v373, 20
      %v562 = vpop.permute.xlu0 %561
      %563 = vrot.lane.b32.xlu0 %v376, 20
      %v564 = vpop.permute.xlu0 %563
      %565 = vrot.lane.b32.xlu0 %v378, 20
      %v566 = vpop.permute.xlu0 %565
      %567 = vrot.lane.b32.xlu0 %v381, 20
      %v568 = vpop.permute.xlu0 %567
      %569 = vrot.lane.b32.xlu0 %v383, 20
      %v570 = vpop.permute.xlu0 %569
      %571 = vrot.lane.b32.xlu0 %v386, 20
      %v572 = vpop.permute.xlu0 %571
      %573 = vrot.lane.b32.xlu0 %v388, 20
      %v574 = vpop.permute.xlu0 %573
      %575 = vrot.lane.b32.xlu0 %v391, 20
      %v576 = vpop.permute.xlu0 %575
      %577 = vrot.lane.b32.xlu0 %v393, 20
      %v578 = vpop.permute.xlu0 %577
      %579 = vrot.lane.b32.xlu0 %v548, 20
      %v580 = vpop.permute.xlu0 %579
      %581 = vrot.lane.b32.xlu0 %v550, 20
      %v582 = vpop.permute.xlu0 %581
      %601 = vrot.lane.b32.xlu0 %v216, 24
      %v602 = vpop.permute.xlu0 %601
      %603 = vrot.lane.b32.xlu0 %v217, 24
      %v604 = vpop.permute.xlu0 %603
      %605 = vrot.lane.b32.xlu0 %v219, 24
      %v606 = vpop.permute.xlu0 %605
      %607 = vrot.lane.b32.xlu0 %v220, 24
      %v608 = vpop.permute.xlu0 %607
      %609 = vrot.lane.b32.xlu0 %v222, 24
      %v610 = vpop.permute.xlu0 %609
      %611 = vrot.lane.b32.xlu0 %v223, 24
      %v612 = vpop.permute.xlu0 %611
      %613 = vrot.lane.b32.xlu0 %v225, 24
      %v614 = vpop.permute.xlu0 %613
      %615 = vrot.lane.b32.xlu0 %v226, 24
      %v616 = vpop.permute.xlu0 %615
      %617 = vrot.lane.b32.xlu0 %v228, 24
      %v618 = vpop.permute.xlu0 %617
      %619 = vrot.lane.b32.xlu0 %v229, 24
      %v620 = vpop.permute.xlu0 %619
      %621 = vrot.lane.b32.xlu0 %v231, 24
      %v622 = vpop.permute.xlu0 %621
      %623 = vrot.lane.b32.xlu0 %v232, 24
      %v624 = vpop.permute.xlu0 %623
      %625 = vrot.lane.b32.xlu0 %v234, 24
      %v626 = vpop.permute.xlu0 %625
      %627 = vrot.lane.b32.xlu0 %v235, 24
      %v628 = vpop.permute.xlu0 %627
      %629 = vrot.lane.b32.xlu0 %v237, 24
      %v630 = vpop.permute.xlu0 %629
      %631 = vrot.lane.b32.xlu0 %v238, 24
      %v632 = vpop.permute.xlu0 %631
      %v650 = vrot.slane %v237, 1
      %v651 = vrot.slane %v238, 1
      %v652 = vsel %vm264, %v650, %v651
      %v653 = vrot.slane %v239, 1
      %v654 = vsel %vm264, %v651, %v653
      %655 = vrot.lane.b32.xlu0 %v277, 28
      %v656 = vpop.permute.xlu0 %655
      %657 = vrot.lane.b32.xlu0 %v279, 28
      %v658 = vpop.permute.xlu0 %657
      %659 = vrot.lane.b32.xlu0 %v282, 28
      %v660 = vpop.permute.xlu0 %659
      %661 = vrot.lane.b32.xlu0 %v284, 28
      %v662 = vpop.permute.xlu0 %661
      %663 = vrot.lane.b32.xlu0 %v287, 28
      %v664 = vpop.permute.xlu0 %663
      %665 = vrot.lane.b32.xlu0 %v289, 28
      %v666 = vpop.permute.xlu0 %665
      %667 = vrot.lane.b32.xlu0 %v292, 28
      %v668 = vpop.permute.xlu0 %667
      %669 = vrot.lane.b32.xlu0 %v294, 28
      %v670 = vpop.permute.xlu0 %669
      %671 = vrot.lane.b32.xlu0 %v297, 28
      %v672 = vpop.permute.xlu0 %671
      %673 = vrot.lane.b32.xlu0 %v299, 28
      %v674 = vpop.permute.xlu0 %673
      %675 = vrot.lane.b32.xlu0 %v302, 28
      %v676 = vpop.permute.xlu0 %675
      %677 = vrot.lane.b32.xlu0 %v304, 28
      %v678 = vpop.permute.xlu0 %677
      %679 = vrot.lane.b32.xlu0 %v495, 28
      %v680 = vpop.permute.xlu0 %679
      %681 = vrot.lane.b32.xlu0 %v497, 28
      %v682 = vpop.permute.xlu0 %681
      %683 = vrot.lane.b32.xlu0 %v652, 28
      %v684 = vpop.permute.xlu0 %683
      %685 = vrot.lane.b32.xlu0 %v654, 28
      %v686 = vpop.permute.xlu0 %685
      %v703 = vrot.slane %v237, 2
      %v704 = vrot.slane %v238, 2
      %v705 = vsel %vm353, %v703, %v704
      %v706 = vrot.slane %v239, 2
      %v707 = vsel %vm353, %v704, %v706
      %708 = vrot.lane.b32.xlu0 %v366, 32
      %v709 = vpop.permute.xlu0 %708
      %710 = vrot.lane.b32.xlu0 %v368, 32
      %v711 = vpop.permute.xlu0 %710
      %712 = vrot.lane.b32.xlu0 %v371, 32
      %v713 = vpop.permute.xlu0 %712
      %714 = vrot.lane.b32.xlu0 %v373, 32
      %v715 = vpop.permute.xlu0 %714
      %716 = vrot.lane.b32.xlu0 %v376, 32
      %v717 = vpop.permute.xlu0 %716
      %718 = vrot.lane.b32.xlu0 %v378, 32
      %v719 = vpop.permute.xlu0 %718
      %720 = vrot.lane.b32.xlu0 %v381, 32
      %v721 = vpop.permute.xlu0 %720
      %722 = vrot.lane.b32.xlu0 %v383, 32
      %v723 = vpop.permute.xlu0 %722
      %724 = vrot.lane.b32.xlu0 %v386, 32
      %v725 = vpop.permute.xlu0 %724
      %726 = vrot.lane.b32.xlu0 %v388, 32
      %v727 = vpop.permute.xlu0 %726
      %728 = vrot.lane.b32.xlu0 %v391, 32
      %v729 = vpop.permute.xlu0 %728
      %730 = vrot.lane.b32.xlu0 %v393, 32
      %v731 = vpop.permute.xlu0 %730
      %732 = vrot.lane.b32.xlu0 %v548, 32
      %v733 = vpop.permute.xlu0 %732
      %734 = vrot.lane.b32.xlu0 %v550, 32
      %v735 = vpop.permute.xlu0 %734
      %736 = vrot.lane.b32.xlu0 %v705, 32
      %v737 = vpop.permute.xlu0 %736
      %738 = vrot.lane.b32.xlu0 %v707, 32
      %v739 = vpop.permute.xlu0 %738
      %vm756 = vcmask 31744
      %v757 = vsel %vm756, %v210, %v306
      %v758 = vsel %vm756, %v211, %v308
      %v759 = vsel %vm756, %v213, %v310
      %v760 = vsel %vm756, %v214, %v312
      %v761 = vsel %vm756, %v216, %v314
      %v762 = vsel %vm756, %v217, %v316
      %v763 = vsel %vm756, %v219, %v318
      %v764 = vsel %vm756, %v220, %v320
      %v765 = vsel %vm756, %v222, %v322
      %v766 = vsel %vm756, %v223, %v324
      %v767 = vsel %vm756, %v225, %v326
      %v768 = vsel %vm756, %v226, %v328
      %v769 = vsel %vm756, %v228, %v330
      %v770 = vsel %vm756, %v229, %v332
      %v771 = vsel %vm756, %v231, %v334
      %v772 = vsel %vm756, %v232, %v336
      %vm773 = vcmask 64512
      %v774 = vsel %vm773, %v757, %v395
      %v775 = vsel %vm773, %v758, %v397
      %v776 = vsel %vm773, %v759, %v399
      %v777 = vsel %vm773, %v760, %v401
      %v778 = vsel %vm773, %v761, %v403
      %v779 = vsel %vm773, %v762, %v405
      %v780 = vsel %vm773, %v763, %v407
      %v781 = vsel %vm773, %v764, %v409
      %v782 = vsel %vm773, %v765, %v411
      %v783 = vsel %vm773, %v766, %v413
      %v784 = vsel %vm773, %v767, %v415
      %v785 = vsel %vm773, %v768, %v417
      %v786 = vsel %vm773, %v769, %v419
      %v787 = vsel %vm773, %v770, %v421
      %v788 = vsel %vm773, %v771, %v423
      %v789 = vsel %vm773, %v772, %v425
      %vm790 = vcmask 97280
      %v791 = vsel %vm790, %v774, %v445
      %v792 = vsel %vm790, %v775, %v447
      %v793 = vsel %vm790, %v776, %v449
      %v794 = vsel %vm790, %v777, %v451
      %v795 = vsel %vm790, %v778, %v453
      %v796 = vsel %vm790, %v779, %v455
      %v797 = vsel %vm790, %v780, %v457
      %v798 = vsel %vm790, %v781, %v459
      %v799 = vsel %vm790, %v782, %v461
      %v800 = vsel %vm790, %v783, %v463
      %v801 = vsel %vm790, %v784, %v465
      %v802 = vsel %vm790, %v785, %v467
      %v803 = vsel %vm790, %v786, %v469
      %v804 = vsel %vm790, %v787, %v471
      %v805 = vsel %vm790, %v788, %v473
      %v806 = vsel %vm790, %v789, %v475
      %vm807 = vcmask 130048
      %v808 = vsel %vm807, %v791, %v499
      %v809 = vsel %vm807, %v792, %v501
      %v810 = vsel %vm807, %v793, %v503
      %v811 = vsel %vm807, %v794, %v505
      %v812 = vsel %vm807, %v795, %v507
      %v813 = vsel %vm807, %v796, %v509
      %v814 = vsel %vm807, %v797, %v511
      %v815 = vsel %vm807, %v798, %v513
      %v816 = vsel %vm807, %v799, %v515
      %v817 = vsel %vm807, %v800, %v517
      %v818 = vsel %vm807, %v801, %v519
      %v819 = vsel %vm807, %v802, %v521
      %v820 = vsel %vm807, %v803, %v523
      %v821 = vsel %vm807, %v804, %v525
      %v822 = vsel %vm807, %v805, %v527
      %v823 = vsel %vm807, %v806, %v529
      %vm824 = vcmask 162816
      %v825 = vsel %vm824, %v808, %v552
      %v826 = vsel %vm824, %v809, %v554
      %v827 = vsel %vm824, %v810, %v556
      %v828 = vsel %vm824, %v811, %v558
      %v829 = vsel %vm824, %v812, %v560
      %v830 = vsel %vm824, %v813, %v562
      %v831 = vsel %vm824, %v814, %v564
      %v832 = vsel %vm824, %v815, %v566
      %v833 = vsel %vm824, %v816, %v568
      %v834 = vsel %vm824, %v817, %v570
      %v835 = vsel %vm824, %v818, %v572
      %v836 = vsel %vm824, %v819, %v574
      %v837 = vsel %vm824, %v820, %v576
      %v838 = vsel %vm824, %v821, %v578
      %v839 = vsel %vm824, %v822, %v580
      %v840 = vsel %vm824, %v823, %v582
      %vm841 = vcmask 195584
      %v842 = vsel %vm841, %v825, %v602
      %v843 = vsel %vm841, %v826, %v604
      %v844 = vsel %vm841, %v827, %v606
      %v845 = vsel %vm841, %v828, %v608
      %v846 = vsel %vm841, %v829, %v610
      %v847 = vsel %vm841, %v830, %v612
      %v848 = vsel %vm841, %v831, %v614
      %v849 = vsel %vm841, %v832, %v616
      %v850 = vsel %vm841, %v833, %v618
      %v851 = vsel %vm841, %v834, %v620
      %v852 = vsel %vm841, %v835, %v622
      %v853 = vsel %vm841, %v836, %v624
      %v854 = vsel %vm841, %v837, %v626
      %v855 = vsel %vm841, %v838, %v628
      %v856 = vsel %vm841, %v839, %v630
      %v857 = vsel %vm841, %v840, %v632
      %vm858 = vcmask 228352
      %v859 = vsel %vm858, %v842, %v656
      %v860 = vsel %vm858, %v843, %v658
      %v861 = vsel %vm858, %v844, %v660
      %v862 = vsel %vm858, %v845, %v662
      %v863 = vsel %vm858, %v846, %v664
      %v864 = vsel %vm858, %v847, %v666
      %v865 = vsel %vm858, %v848, %v668
      %v866 = vsel %vm858, %v849, %v670
      %v867 = vsel %vm858, %v850, %v672
      %v868 = vsel %vm858, %v851, %v674
      %v869 = vsel %vm858, %v852, %v676
      %v870 = vsel %vm858, %v853, %v678
      %v871 = vsel %vm858, %v854, %v680
      %v872 = vsel %vm858, %v855, %v682
      %v873 = vsel %vm858, %v856, %v684
      %v874 = vsel %vm858, %v857, %v686
      %vm875 = vcmask 261120
      %v876 = vsel %vm875, %v859, %v709
      %v877 = vsel %vm875, %v860, %v711
      %v878 = vsel %vm875, %v861, %v713
      %v879 = vsel %vm875, %v862, %v715
      %v880 = vsel %vm875, %v863, %v717
      %v881 = vsel %vm875, %v864, %v719
      %v882 = vsel %vm875, %v865, %v721
      %v883 = vsel %vm875, %v866, %v723
      %v884 = vsel %vm875, %v867, %v725
      %v885 = vsel %vm875, %v868, %v727
      %v886 = vsel %vm875, %v869, %v729
      %v887 = vsel %vm875, %v870, %v731
      %v888 = vsel %vm875, %v871, %v733
      %v889 = vsel %vm875, %v872, %v735
      %v890 = vsel %vm875, %v873, %v737
      %v891 = vsel %vm875, %v874, %v739
      %v892 = vld [vmem:[%s1] sm:$0xff]
      %v893 = vld [vmem:[%s1 + $0x8] sm:$0xff]
      %v894 = vld [vmem:[%s1 + $0x10] sm:$0xff]
      %v895 = vld [vmem:[%s1 + $0x18] sm:$0xff]
      %v896 = vld [vmem:[%s1 + $0x20] sm:$0xf]
      %v897 = vld [vmem:[%s2] sm:$0x1]
      %v899 = vlaneseq
      %v900 = vshrl.u32 %v899, 7
      %v901 = vsub.s32 0, %v900
      %v902 = vrot.slane %v897, %v901
      %vm904 = vcmask 293888
      %v906 = vsel %vm904, %v876, 0
      %v909 = vsel %vm904, %v877, 0
      %v912 = vsel %vm904, %v878, 0
      %v915 = vsel %vm904, %v879, 0
      %v918 = vsel %vm904, %v880, 0
      %v921 = vsel %vm904, %v881, 0
      %v924 = vsel %vm904, %v882, 0
      %v927 = vsel %vm904, %v883, 0
      %v930 = vsel %vm904, %v884, 0
      %v933 = vsel %vm904, %v885, 0
      %v936 = vsel %vm904, %v886, 0
      %v939 = vsel %vm904, %v887, 0
      %v942 = vsel %vm904, %v888, 0
      %v945 = vsel %vm904, %v889, 0
      %v948 = vsel %vm904, %v890, 0
      %v951 = vsel %vm904, %v891, 0
      %vm953 = vcmask 1043456
      %v955 = vsel %vm953, %v896, 0
      %957 = vmatprep.subr.mxu0 0.0
      %958 = vmatpush1.msra.mxu0 %v892
      %959 = vmatprep.subr.mxu0 0.0
      %960 = vmatpush1.msra.mxu0 %v893
      %961 = vmatprep.subr.mxu0 0.0
      %962 = vmatpush1.msra.mxu0 %v894
      %963 = vmatprep.subr.mxu0 0.0
      %964 = vmatpush1.msra.mxu0 %v895
      %965 = vmatprep.subr.mxu0 0.0
      %966 = vmatpush1.msra.mxu0 %v955
      %967 = vmatprep.subr.mxu0 0.0
      %968 = vmatpush1.msra.mxu0 0.0
      %969 = vmatprep.subr.mxu0 0.0
      %970 = vmatpush1.msra.mxu0 0.0
      %971 = vmatprep.subr.mxu0 0.0
      %972 = vmatpush1.msra.mxu0 0.0
      %973 = vmatprep.subr.mxu0 0.0
      %974 = vmatpush1.msra.mxu0 0.0
      %975 = vmatprep.subr.mxu0 0.0
      %976 = vmatpush1.msra.mxu0 0.0
      %977 = vmatprep.subr.mxu0 0.0
      %978 = vmatpush1.msra.mxu0 0.0
      %979 = vmatprep.subr.mxu0 0.0
      %980 = vmatpush1.msra.mxu0 0.0
      %981 = vmatprep.subr.mxu0 0.0
      %982 = vmatpush1.msra.mxu0 0.0
      %983 = vmatprep.subr.mxu0 0.0
      %984 = vmatpush1.msra.mxu0 0.0
      %985 = vmatprep.subr.mxu0 0.0
      %986 = vmatpush1.msra.mxu0 0.0
      %987 = vmatprep.subr.mxu0 0.0
      %988 = vmatpush1.msra.mxu0 0.0
      %989 = vmatprep.subr.mxu0 0.0
      %990 = vmatpush1.msra.mxu0 0.0
      %991 = vmatprep.subr.mxu0 0.0
      %992 = vmatpush1.msra.mxu0 0.0
      %993 = vmatprep.subr.mxu0 0.0
      %994 = vmatpush1.msra.mxu0 0.0
      %995 = vmatprep.subr.mxu0 0.0
      %996 = vmatpush1.msra.mxu0 0.0
      %997 = vmatprep.subr.mxu0 0.0
      %998 = vmatpush1.msra.mxu0 0.0
      %999 = vmatprep.subr.mxu0 0.0
      %1000 = vmatpush1.msra.mxu0 0.0
      %1001 = vmatprep.subr.mxu0 0.0
      %1002 = vmatpush1.msra.mxu0 0.0
      %1003 = vmatprep.subr.mxu0 0.0
      %1004 = vmatpush1.msra.mxu0 0.0
      %1005 = vmatprep.subr.mxu0 0.0
      %1006 = vmatpush1.msra.mxu0 0.0
      %1007 = vmatprep.subr.mxu0 0.0
      %1008 = vmatpush1.msra.mxu0 0.0
      %1009 = vmatprep.subr.mxu0 0.0
      %1010 = vmatpush1.msra.mxu0 0.0
      %1011 = vmatprep.subr.mxu0 0.0
      %1012 = vmatpush1.msra.mxu0 0.0
      %1013 = vmatprep.subr.mxu0 0.0
      %1014 = vmatpush1.msra.mxu0 0.0
      %1015 = vmatprep.subr.mxu0 0.0
      %1016 = vmatpush1.msra.mxu0 0.0
      %1017 = vmatprep.subr.mxu0 0.0
      %1018 = vmatpush1.msra.mxu0 0.0
      %1019 = vmatprep.subr.mxu0 0.0
      %1020 = vmatpush1.msra.mxu0 0.0
      %1021 = vmatprep.mubr.f32.mxu0 0.0
      %1022 = vmatmul.mubr.f32.gmra.mrb[0].mxu0 %v906
      %v1023 = vpop.f32.mrb[0].mxu0
      %v1024 = vadd.f32 %v902, %v1023
      %v1025 = vpop.f32.mrb[0].mxu0
      %1026 = vmatprep.mubr.f32.mxu0 0.0
      %1027 = vmatmul.mubr.f32.gmra.mrb[0].mxu0 %v909
      %v1028 = vpop.f32.mrb[0].mxu0
      %v1029 = vadd.f32 %v902, %v1028
      %v1030 = vpop.f32.mrb[0].mxu0
      %1031 = vmatprep.mubr.f32.mxu0 0.0
      %1032 = vmatmul.mubr.f32.gmra.mrb[0].mxu0 %v912
      %v1033 = vpop.f32.mrb[0].mxu0
      %v1034 = vadd.f32 %v902, %v1033
      %v1035 = vpop.f32.mrb[0].mxu0
      %1036 = vmatprep.mubr.f32.mxu0 0.0
      %1037 = vmatmul.mubr.f32.gmra.mrb[0].mxu0 %v915
      %v1038 = vpop.f32.mrb[0].mxu0
      %v1039 = vadd.f32 %v902, %v1038
      %v1040 = vpop.f32.mrb[0].mxu0
      %1041 = vmatprep.mubr.f32.mxu0 0.0
      %1042 = vmatmul.mubr.f32.gmra.mrb[0].mxu0 %v918
      %v1043 = vpop.f32.mrb[0].mxu0
      %v1044 = vadd.f32 %v902, %v1043
      %v1045 = vpop.f32.mrb[0].mxu0
      %1046 = vmatprep.mubr.f32.mxu0 0.0
      %1047 = vmatmul.mubr.f32.gmra.mrb[0].mxu0 %v921
      %v1048 = vpop.f32.mrb[0].mxu0
      %v1049 = vadd.f32 %v902, %v1048
      %v1050 = vpop.f32.mrb[0].mxu0
      %1051 = vmatprep.mubr.f32.mxu0 0.0
      %1052 = vmatmul.mubr.f32.gmra.mrb[0].mxu0 %v924
      %v1053 = vpop.f32.mrb[0].mxu0
      %v1054 = vadd.f32 %v902, %v1053
      %v1055 = vpop.f32.mrb[0].mxu0
      %1056 = vmatprep.mubr.f32.mxu0 0.0
      %1057 = vmatmul.mubr.f32.gmra.mrb[0].mxu0 %v927
      %v1058 = vpop.f32.mrb[0].mxu0
      %v1059 = vadd.f32 %v902, %v1058
      %v1060 = vpop.f32.mrb[0].mxu0
      %1061 = vmatprep.mubr.f32.mxu0 0.0
      %1062 = vmatmul.mubr.f32.gmra.mrb[0].mxu0 %v930
      %v1063 = vpop.f32.mrb[0].mxu0
      %v1064 = vadd.f32 %v902, %v1063
      %v1065 = vpop.f32.mrb[0].mxu0
      %1066 = vmatprep.mubr.f32.mxu0 0.0
      %1067 = vmatmul.mubr.f32.gmra.mrb[0].mxu0 %v933
      %v1068 = vpop.f32.mrb[0].mxu0
      %v1069 = vadd.f32 %v902, %v1068
      %v1070 = vpop.f32.mrb[0].mxu0
      %1071 = vmatprep.mubr.f32.mxu0 0.0
      %1072 = vmatmul.mubr.f32.gmra.mrb[0].mxu0 %v936
      %v1073 = vpop.f32.mrb[0].mxu0
      %v1074 = vadd.f32 %v902, %v1073
      %v1075 = vpop.f32.mrb[0].mxu0
      %1076 = vmatprep.mubr.f32.mxu0 0.0
      %1077 = vmatmul.mubr.f32.gmra.mrb[0].mxu0 %v939
      %v1078 = vpop.f32.mrb[0].mxu0
      %v1079 = vadd.f32 %v902, %v1078
      %v1080 = vpop.f32.mrb[0].mxu0
      %1081 = vmatprep.mubr.f32.mxu0 0.0
      %1082 = vmatmul.mubr.f32.gmra.mrb[0].mxu0 %v942
      %v1083 = vpop.f32.mrb[0].mxu0
      %v1084 = vadd.f32 %v902, %v1083
      %v1085 = vpop.f32.mrb[0].mxu0
      %1086 = vmatprep.mubr.f32.mxu0 0.0
      %1087 = vmatmul.mubr.f32.gmra.mrb[0].mxu0 %v945
      %v1088 = vpop.f32.mrb[0].mxu0
      %v1089 = vadd.f32 %v902, %v1088
      %v1090 = vpop.f32.mrb[0].mxu0
      %1091 = vmatprep.mubr.f32.mxu0 0.0
      %1092 = vmatmul.mubr.f32.gmra.mrb[0].mxu0 %v948
      %v1093 = vpop.f32.mrb[0].mxu0
      %v1094 = vadd.f32 %v902, %v1093
      %v1095 = vpop.f32.mrb[0].mxu0
      %1096 = vmatprep.mubr.f32.mxu0 0.0
      %1097 = vmatmul.mubr.f32.gmra.mrb[0].mxu0 %v951
      %v1098 = vpop.f32.mrb[0].mxu0
      %v1099 = vadd.f32 %v902, %v1098
      %v1100 = vpop.f32.mrb[0].mxu0
      %1101 = vdwg.mxu0
      %1102 = vst.msk [vmem:[%s208] sm:$0xff] %vm807, %v1024
      %1103 = vst.msk [vmem:[%s208 + $0x8] sm:$0xff] %vm807, %v1029
      %1104 = vst.msk [vmem:[%s208 + $0x10] sm:$0xff] %vm807, %v1034
      %1105 = vst.msk [vmem:[%s208 + $0x18] sm:$0xff] %vm807, %v1039
      %1106 = vst.msk [vmem:[%s208 + $0x20] sm:$0xff] %vm807, %v1044
      %1107 = vst.msk [vmem:[%s208 + $0x28] sm:$0xff] %vm807, %v1049
      %1108 = vst.msk [vmem:[%s208 + $0x30] sm:$0xff] %vm807, %v1054
      %1109 = vst.msk [vmem:[%s208 + $0x38] sm:$0xff] %vm807, %v1059
      %1110 = vst.msk [vmem:[%s208 + $0x40] sm:$0xff] %vm807, %v1064
      %1111 = vst.msk [vmem:[%s208 + $0x48] sm:$0xff] %vm807, %v1069
      %1112 = vst.msk [vmem:[%s208 + $0x50] sm:$0xff] %vm807, %v1074
      %1113 = vst.msk [vmem:[%s208 + $0x58] sm:$0xff] %vm807, %v1079
      %1114 = vst.msk [vmem:[%s208 + $0x60] sm:$0xff] %vm807, %v1084
      %1115 = vst.msk [vmem:[%s208 + $0x68] sm:$0xff] %vm807, %v1089
      %1116 = vst.msk [vmem:[%s208 + $0x70] sm:$0xff] %vm807, %v1094
      %1117 = vst.msk [vmem:[%s208 + $0x78] sm:$0xff] %vm807, %v1099
      %s1118 = smul.u32 8, %s19
      %p1119 = scmp.lt.s32.totalorder %s18, 1
      %s1120 = scalar_select %p1119, %s18, 1
      %p1121 = scmp.lt.s32.totalorder %s1118, 15
      %s1122 = scalar_select %p1121, %s1118, 15
      %s1123 = smul.addr %s1122, 2
      %s1124 = smul.addr %s1120, 32
      %s1125 = sadd.s32 %s1123, %s1124
      %s1126 = smul.addr %s1125, 8
      %s1127 = scalar_lea.vmem %s3, %s1126
      // Predicated region
      $region33: #{upsample_block_forward.1} parent=31 // pred_check
        %p1128 = pneg %p116
      $region34: #{upsample_block_forward.1} parent=31 // pred_check_branch
        %1130 = sbr.rel (%p1128) target = $region36
      $region35: #{upsample_block_forward.1} parent=31 // pred_region
        %s1131 = smul.u32 8, %s19
      $region36: #{upsample_block_forward.1} parent=31 // pred_fallthru
        _
    $region32: #{upsample_block_forward.1} parent=5 // pred_fallthru
      _
    %p1132 = scmp.le.s32.totalorder 2, %s9
    // Predicated region
    $region37: #{upsample_block_forward.1} parent=5 // pred_check
      %p1133 = pneg %p1132
    $region38: #{upsample_block_forward.1} parent=5 // pred_check_branch
      %1135 = sbr.rel (%p1133) target = $region40
    $region39: #{upsample_block_forward.1} parent=5 // pred_region
      %s1136 = ssub.s32 %s9, 2
      // Predicated region
      $region41: #{upsample_block_forward.1} parent=39 // pred_check
        %p1137 = pneg %p122
      $region42: #{upsample_block_forward.1} parent=39 // pred_check_branch
        %1139 = sbr.rel (%p1137) target = $region44
      $region43: #{upsample_block_forward.1} parent=39 // pred_region
        %s1140 = smul.u32 8, %s21
        %p1141 = scmp.lt.s32.totalorder %s20, 1
        %s1142 = scalar_select %p1141, %s20, 1
        %p1143 = scmp.lt.s32.totalorder %s1140, 15
        %s1144 = scalar_select %p1143, %s1140, 15
        %s1145 = smul.addr %s1144, 2
        %s1146 = smul.addr %s1142, 32
        %s1147 = sadd.s32 %s1145, %s1146
        %s1148 = smul.addr %s1147, 8
        %s1149 = scalar_lea.vmem %s3, %s1148
      $region44: #{upsample_block_forward.1} parent=39 // pred_fallthru
        _
    $region40: #{upsample_block_forward.1} parent=5 // pred_fallthru
      _
  $region6: #{upsample_block_forward.1} parent=0 // loop_footer
    %s13 = sadd.s32 1, %s9
  $region7: #{upsample_block_forward.1} parent=0 // loop_footer_branch
    %8 = sbr.rel target = $region3
  $region8: #{upsample_block_forward.1} parent=0 // loop_exit
    _

</llo_original>
